<compile_context>
chip_gen: v6e
topology: v6e:2x2x1
jax: 0.10.0
libtpu: 0.0.40
codegen_flags: <defaults>
</compile_context>

<pallas_src>
import jax
import jax.numpy as jnp
from jax.experimental import pallas as pl
from jax.experimental.pallas import tpu as pltpu


def mlp_kernel(x_ref, p_ref, w2_ref, w3_ref, o_ref):
    # p_ref is the packed small-param array (5, 64) f32:
    #   rows 0-1 = W1^T, row 2 = b1, row 3 = b2, row 4 = [b3, 0...].
    x = x_ref[...]                                   # (tb, 2) f32

    # Layer 1 (in=2, out=64): K=2 wastes 126/128 of the MXU contraction depth,
    # so do it on the VPU as two broadcast multiply-adds (all f32).
    h1 = (x[:, 0:1] * p_ref[0:1, :]
          + x[:, 1:2] * p_ref[1:2, :]
          + p_ref[2:3, :])
    h1 = jnp.maximum(h1, 0.0)

    # Layer 2 (64x64) on the MXU: bf16 inputs, f32 accumulation; bias/ReLU f32.
    h2 = jnp.dot(h1.astype(w2_ref.dtype), w2_ref[...],
                 preferred_element_type=jnp.float32) + p_ref[3:4, :]
    h2 = jnp.maximum(h2, 0.0)

    # Layer 3 (64 -> 4): narrow MXU matmul, output written unpadded (tb, 4).
    out = jnp.dot(h2.astype(w3_ref.dtype), w3_ref[...],
                  preferred_element_type=jnp.float32) + p_ref[4:5, 0:4]
    o_ref[...] = out.astype(o_ref.dtype)


def _round_up(n, m):
    return ((n + m - 1) // m) * m


def _choose_tile(batch, tb_max):
    """Pick a batch tile: multiple of 8, >=2 grid steps for medium batches."""
    tb_max = max(8, _round_up(tb_max, 8))
    b8 = _round_up(batch, 8)
    if b8 <= 8:
        return 8                                   # tiny batch: single step
    if b8 <= tb_max:
        # Split across two grid steps so v7x's second TensorCore gets work.
        return _round_up(pl.cdiv(b8, 2), 8)
    return tb_max


def net_forward(x, params, *, tb_max=2048):
    """x: [B, 2] float32. Returns [B, 4] float32 (same semantics as Net.forward)."""
    B = x.shape[0]
    tb = _choose_tile(B, tb_max)
    grid = (pl.cdiv(B, tb),)                       # boundary block handled by Pallas

    p_small = params["p_small"]                    # (5, 64) f32
    w2t = params["w2t"]                            # (64, 64) bf16
    w3t = params["w3t"]                            # (64, 4)  bf16

    def full(arr):
        return pl.BlockSpec(arr.shape, lambda i: (0,) * arr.ndim)

    out = pl.pallas_call(
        mlp_kernel,
        out_shape=jax.ShapeDtypeStruct((B, 4), jnp.float32),
        grid_spec=pltpu.PrefetchScalarGridSpec(
            num_scalar_prefetch=0,
            grid=grid,
            in_specs=[
                pl.BlockSpec((tb, 2), lambda i: (i, 0)),   # x batch tile
                full(p_small),                              # packed small params
                full(w2t),
                full(w3t),
            ],
            out_specs=pl.BlockSpec((tb, 4), lambda i: (i, 0)),
        ),
        compiler_params=pltpu.CompilerParams(
            dimension_semantics=("parallel",),     # batch axis shards across TCs
            vmem_limit_bytes=32 * 1024 * 1024,     # portable headroom (v5e default is 16 MiB)
        ),
    )(x, p_small, w2t, w3t)
    return out


def init_params(key):
    """Deterministic init matching nn.Linear shapes: (out, in) weights, (out,) biases."""
    ks = jax.random.split(key, 6)

    def linear(kw, kb, fan_in, fan_out):
        bound = fan_in ** -0.5  # PyTorch default init bound
        w = jax.random.uniform(kw, (fan_out, fan_in), jnp.float32, -bound, bound)
        b = jax.random.uniform(kb, (fan_out,), jnp.float32, -bound, bound)
        return w, b

    w1, b1 = linear(ks[0], ks[1], 2, 64)
    w2, b2 = linear(ks[2], ks[3], 64, 64)
    w3, b3 = linear(ks[4], ks[5], 64, 4)

    # Pack the small f32 params into one VMEM-resident array (fewer inputs).
    p_small = jnp.zeros((5, 64), jnp.float32)
    p_small = p_small.at[0:2, :].set(w1.T)
    p_small = p_small.at[2, :].set(b1)
    p_small = p_small.at[3, :].set(b2)
    p_small = p_small.at[4, :4].set(b3)

    return {
        # kernel params
        "p_small": p_small,
        "w2t": w2.T.astype(jnp.bfloat16),
        "w3t": w3.T.astype(jnp.bfloat16),
        # full-precision copies for the references
        "w1t_f32": w1.T, "b1_f32": b1.reshape(1, 64),
        "w2t_f32": w2.T, "b2_f32": b2.reshape(1, 64),
        "w3t_f32": w3.T, "b3_f32": b3.reshape(1, 4),
    }


def reference_forward_quantized(x, params):
    """Mirrors the kernel's numerics (bf16 matmul inputs, f32 accumulation)."""
    w1 = params["w1t_f32"]
    h1 = x[:, 0:1] * w1[0:1, :] + x[:, 1:2] * w1[1:2, :] + params["b1_f32"]
    h1 = jnp.maximum(h1, 0.0)
    h2 = jnp.dot(h1.astype(jnp.bfloat16), params["w2t"],
                 preferred_element_type=jnp.float32) + params["b2_f32"]
    h2 = jnp.maximum(h2, 0.0)
    out = jnp.dot(h2.astype(jnp.bfloat16), params["w3t"],
                  preferred_element_type=jnp.float32) + params["b3_f32"]
    return out


def reference_forward_f32(x, params):
    """Pure-f32 reference matching the PyTorch module exactly."""
    h1 = jnp.maximum(x @ params["w1t_f32"] + params["b1_f32"], 0.0)
    h2 = jnp.maximum(h1 @ params["w2t_f32"] + params["b2_f32"], 0.0)
    return h2 @ params["w3t_f32"] + params["b3_f32"]


if __name__ == "__main__":
    key = jax.random.PRNGKey(0)
    kx, kp = jax.random.split(key)
    B = 64  # small harness batch; wrapper handles any B
    x = jax.random.normal(kx, (B, 2), jnp.float32)
    params = init_params(kp)

    out = jax.block_until_ready(net_forward(x, params))
    assert out.shape == (B, 4)

    # Tight check against a reference with the same bf16-input / f32-accum numerics.
    ref_q = reference_forward_quantized(x, params)
    assert jnp.allclose(out, ref_q, atol=1e-4, rtol=1e-4), "mismatch vs quantized ref"

    # Sanity check against the pure-f32 PyTorch-equivalent forward
    # (bf16 weight quantization introduces ~1e-3 relative error).
    ref_f32 = reference_forward_f32(x, params)
    assert jnp.allclose(out, ref_f32, atol=5e-2, rtol=5e-2), "mismatch vs f32 ref"

    print("KERNEL_OK")
</pallas_src>

<mosaic_0001>
module attributes {stable_mosaic.version = 11 : i64} {
  func.func @mlp_kernel(%arg0: i32, %arg1: memref<32x2xf32, #tpu.memory_space<vmem>>, %arg2: memref<5x64xf32, #tpu.memory_space<vmem>>, %arg3: memref<64x64xbf16, #tpu.memory_space<vmem>>, %arg4: memref<64x4xbf16, #tpu.memory_space<vmem>>, %arg5: memref<32x4xf32, #tpu.memory_space<vmem>>) attributes {dimension_semantics = [#tpu.dimension_semantics<parallel>], iteration_bounds = array<i64: 2>, scalar_prefetch = 0 : i64, scratch_operands = 0 : i64, tpu.core_type = #tpu.core_type<tc>, window_params = [{transform_indices = @transform_0, window_bounds = array<i64: 32, 2>}, {pipeline_mode = #tpu.pipeline_mode<synchronous>, transform_indices = @transform_1, window_bounds = array<i64: 5, 64>}, {pipeline_mode = #tpu.pipeline_mode<synchronous>, transform_indices = @transform_2, window_bounds = array<i64: 64, 64>}, {pipeline_mode = #tpu.pipeline_mode<synchronous>, transform_indices = @transform_3, window_bounds = array<i64: 64, 4>}, {transform_indices = @transform_4, window_bounds = array<i64: 32, 4>}]} {
    %c0 = arith.constant 0 : index
    %c0_0 = arith.constant 0 : index
    %0 = vector.load %arg1[%c0, %c0_0] : memref<32x2xf32, #tpu.memory_space<vmem>>, vector<32x2xf32>
    %1 = vector.extract_strided_slice %0 {offsets = [0, 0], sizes = [32, 1], strides = [1, 1]} : vector<32x2xf32> to vector<32x1xf32>
    %c0_1 = arith.constant 0 : index
    %c0_2 = arith.constant 0 : index
    %2 = vector.load %arg2[%c0_1, %c0_2] : memref<5x64xf32, #tpu.memory_space<vmem>>, vector<1x64xf32>
    %3 = vector.broadcast %1 : vector<32x1xf32> to vector<32x64xf32>
    %4 = vector.broadcast %2 : vector<1x64xf32> to vector<32x64xf32>
    %5 = arith.mulf %3, %4 : vector<32x64xf32>
    %6 = vector.extract_strided_slice %0 {offsets = [0, 1], sizes = [32, 1], strides = [1, 1]} : vector<32x2xf32> to vector<32x1xf32>
    %c1 = arith.constant 1 : index
    %c0_3 = arith.constant 0 : index
    %7 = vector.load %arg2[%c1, %c0_3] : memref<5x64xf32, #tpu.memory_space<vmem>>, vector<1x64xf32>
    %8 = vector.broadcast %6 : vector<32x1xf32> to vector<32x64xf32>
    %9 = vector.broadcast %7 : vector<1x64xf32> to vector<32x64xf32>
    %10 = arith.mulf %8, %9 : vector<32x64xf32>
    %11 = arith.addf %5, %10 : vector<32x64xf32>
    %c2 = arith.constant 2 : index
    %c0_4 = arith.constant 0 : index
    %12 = vector.load %arg2[%c2, %c0_4] : memref<5x64xf32, #tpu.memory_space<vmem>>, vector<1x64xf32>
    %13 = vector.broadcast %12 : vector<1x64xf32> to vector<32x64xf32>
    %14 = arith.addf %11, %13 : vector<32x64xf32>
    %cst = arith.constant 0.000000e+00 : f32
    %15 = vector.broadcast %cst : f32 to vector<32x64xf32>
    %16 = arith.maximumf %14, %15 : vector<32x64xf32>
    %17 = arith.truncf %16 : vector<32x64xf32> to vector<32x64xbf16>
    %c0_5 = arith.constant 0 : index
    %c0_6 = arith.constant 0 : index
    %18 = vector.load %arg3[%c0_5, %c0_6] : memref<64x64xbf16, #tpu.memory_space<vmem>>, vector<64x64xbf16>
    %cst_7 = arith.constant dense<0.000000e+00> : vector<32x64xf32>
    %19 = tpu.matmul %17, %18, %cst_7 {dimension_numbers = #tpu.dot_dimension_numbers<[1], [0], [0], [1], [0, 0, 1, 1], [], []>} : vector<32x64xbf16>, vector<64x64xbf16>, vector<32x64xf32> -> vector<32x64xf32>
    %c3 = arith.constant 3 : index
    %c0_8 = arith.constant 0 : index
    %20 = vector.load %arg2[%c3, %c0_8] : memref<5x64xf32, #tpu.memory_space<vmem>>, vector<1x64xf32>
    %21 = vector.broadcast %20 : vector<1x64xf32> to vector<32x64xf32>
    %22 = arith.addf %19, %21 : vector<32x64xf32>
    %cst_9 = arith.constant 0.000000e+00 : f32
    %23 = vector.broadcast %cst_9 : f32 to vector<32x64xf32>
    %24 = arith.maximumf %22, %23 : vector<32x64xf32>
    %25 = arith.truncf %24 : vector<32x64xf32> to vector<32x64xbf16>
    %c0_10 = arith.constant 0 : index
    %c0_11 = arith.constant 0 : index
    %26 = vector.load %arg4[%c0_10, %c0_11] : memref<64x4xbf16, #tpu.memory_space<vmem>>, vector<64x4xbf16>
    %cst_12 = arith.constant dense<0.000000e+00> : vector<32x4xf32>
    %27 = tpu.matmul %25, %26, %cst_12 {dimension_numbers = #tpu.dot_dimension_numbers<[1], [0], [0], [1], [0, 0, 1, 1], [], []>} : vector<32x64xbf16>, vector<64x4xbf16>, vector<32x4xf32> -> vector<32x4xf32>
    %c4 = arith.constant 4 : index
    %c0_13 = arith.constant 0 : index
    %28 = vector.load %arg2[%c4, %c0_13] : memref<5x64xf32, #tpu.memory_space<vmem>>, vector<1x4xf32>
    %29 = vector.broadcast %28 : vector<1x4xf32> to vector<32x4xf32>
    %30 = arith.addf %27, %29 : vector<32x4xf32>
    %c0_14 = arith.constant 0 : index
    %c0_15 = arith.constant 0 : index
    %31 = vector.load %arg5[%c0_14, %c0_15] : memref<32x4xf32, #tpu.memory_space<vmem>>, vector<32x4xf32>
    tpu.vector_store %arg5[%c0_14, %c0_15], %30 {strides = array<i32>} : memref<32x4xf32, #tpu.memory_space<vmem>>, vector<32x4xf32>,
    return
  }
  func.func @transform_0(%arg0: i32) -> (i32, i32) {
    %c0_i32 = arith.constant 0 : i32
    %c0_i32_0 = arith.constant 0 : i32
    return %arg0, %c0_i32 : i32, i32
  }
  func.func @transform_1(%arg0: i32) -> (i32, i32) {
    %c0_i32 = arith.constant 0 : i32
    %c0_i32_0 = arith.constant 0 : i32
    %c0_i32_1 = arith.constant 0 : i32
    return %c0_i32, %c0_i32_0 : i32, i32
  }
  func.func @transform_2(%arg0: i32) -> (i32, i32) {
    %c0_i32 = arith.constant 0 : i32
    %c0_i32_0 = arith.constant 0 : i32
    %c0_i32_1 = arith.constant 0 : i32
    return %c0_i32, %c0_i32_0 : i32, i32
  }
  func.func @transform_3(%arg0: i32) -> (i32, i32) {
    %c0_i32 = arith.constant 0 : i32
    %c0_i32_0 = arith.constant 0 : i32
    %c0_i32_1 = arith.constant 0 : i32
    return %c0_i32, %c0_i32_0 : i32, i32
  }
  func.func @transform_4(%arg0: i32) -> (i32, i32) {
    %c0_i32 = arith.constant 0 : i32
    %c0_i32_0 = arith.constant 0 : i32
    return %arg0, %c0_i32 : i32, i32
  }
}

</mosaic_0001>

<llo_original>
// kernel: tpu_custom_call.1
$region0: #{tpu_custom_call.1}
  #allocation0 [shape = 'u32[]', space=smem, size = 0x4, offset = 0x4, fixed_abs, tag = 'smem constant byte address 0x4 - core index']
  #allocation1 [shape = 'u32[144,128]{1,0:T(1,128)}', space=vmem, size = 0x12000, scoped, tag = 'internal scratch']
  %s0 = inlined_call_operand.vmem [shape: f32[64,2], index: 0, kind: input, shape index: {}]
  %s1 = inlined_call_operand.vmem [shape: f32[5,64], index: 1, kind: input, shape index: {}]
  %s2 = inlined_call_operand.vmem [shape: bf16[64,64], index: 2, kind: input, shape index: {}]
  %s3 = inlined_call_operand.vmem [shape: bf16[64,4], index: 3, kind: input, shape index: {}]
  %s4 = inlined_call_operand.vmem [shape: f32[64,4], index: 4, kind: output, shape index: {}]
  %s5 = sld [smem:[#allocation0]]
  $region49: #{tpu_custom_call.1} parent=0
    _
  %s7 = ssub.s32 1, %s5
  %s8 = scalar_select 0, %s7, %s5
  loop: start=0, step=1, limit=4
  $region2: #{tpu_custom_call.1} parent=0 // loop_pre_header
    _
  $region3: #{tpu_custom_call.1} parent=0 // loop_header
    %s10 = sphi 0, %s14
    %p11 = scmp.ge.s32.totalorder %s10, 4
    %s20 = sphi 0, %s22
    %s23 = sphi 0, %s20
    %s24 = sphi 0, %s23
    %s40 = sphi 0, %s24
    %s44 = sphi 0, %s44
    %s46 = sphi 0, %s44
    %s47 = sphi 0, %s46
    %s61 = sphi 0, %s47
    %s65 = sphi 0, %s65
    %s67 = sphi 0, %s65
    %s68 = sphi 0, %s67
    %s82 = sphi 0, %s68
    %s86 = sphi 0, %s86
    %s88 = sphi 0, %s86
    %s89 = sphi 0, %s88
    %s103 = sphi 0, %s89
    %s109 = sphi 0, %s111
    %s112 = sphi 0, %s109
    %s113 = sphi 0, %s112
    %s129 = sphi 0, %s113
  $region4: #{tpu_custom_call.1} parent=0 // loop_header_branch
    %13 = sbr.rel (%p11) target = $region8
  $region5: #{tpu_custom_call.1} parent=0 // loop_body
    %s15 = ssub.s32 %s10, 1
    %s16 = ssub.s32 %s10, 2
    %s17 = sadd.s32 %s10, 1
    %s18 = ssub.s32 %s10, %s17
    %p19 = scmp.eq.s32.totalorder %s18, 0
    %s21 = sadd.s32 %s20, 1
    %s22 = scalar_select %p19, %s20, %s21
    %p25 = pneg %p19
    %p26 = scmp.eq.s32.totalorder %s10, 1
    %p27 = por %p25, %p26
    %p28 = scmp.ne.s32.totalorder %s20, %s23
    %p29 = scmp.eq.s32.totalorder %s10, 0
    %p30 = por %p28, %p29
    %p31 = scmp.ne.s32.totalorder %s20, %s23
    %p32 = scmp.eq.s32.totalorder %s15, 1
    %p33 = por %p31, %p32
    %p34 = scmp.ne.s32.totalorder %s23, %s24
    %p35 = scmp.eq.s32.totalorder %s15, 0
    %p36 = por %p34, %p35
    %p37 = scmp.ne.s32.totalorder %s23, %s24
    %p38 = scmp.eq.s32.totalorder %s16, 1
    %p39 = por %p37, %p38
    %p41 = scmp.ne.s32.totalorder %s24, %s40
    %p42 = scmp.eq.s32.totalorder %s16, 0
    %p43 = por %p41, %p42
    %s45 = sadd.s32 %s44, 1
    %p48 = scmp.eq.s32.totalorder %s10, 1
    %p49 = scmp.ne.s32.totalorder %s44, %s46
    %p50 = scmp.eq.s32.totalorder %s10, 0
    %p51 = por %p49, %p50
    %p52 = scmp.ne.s32.totalorder %s44, %s46
    %p53 = scmp.eq.s32.totalorder %s15, 1
    %p54 = por %p52, %p53
    %p55 = scmp.ne.s32.totalorder %s46, %s47
    %p56 = scmp.eq.s32.totalorder %s15, 0
    %p57 = por %p55, %p56
    %p58 = scmp.ne.s32.totalorder %s46, %s47
    %p59 = scmp.eq.s32.totalorder %s16, 1
    %p60 = por %p58, %p59
    %p62 = scmp.ne.s32.totalorder %s47, %s61
    %p63 = scmp.eq.s32.totalorder %s16, 0
    %p64 = por %p62, %p63
    %s66 = sadd.s32 %s65, 1
    %p69 = scmp.eq.s32.totalorder %s10, 1
    %p70 = scmp.ne.s32.totalorder %s65, %s67
    %p71 = scmp.eq.s32.totalorder %s10, 0
    %p72 = por %p70, %p71
    %p73 = scmp.ne.s32.totalorder %s65, %s67
    %p74 = scmp.eq.s32.totalorder %s15, 1
    %p75 = por %p73, %p74
    %p76 = scmp.ne.s32.totalorder %s67, %s68
    %p77 = scmp.eq.s32.totalorder %s15, 0
    %p78 = por %p76, %p77
    %p79 = scmp.ne.s32.totalorder %s67, %s68
    %p80 = scmp.eq.s32.totalorder %s16, 1
    %p81 = por %p79, %p80
    %p83 = scmp.ne.s32.totalorder %s68, %s82
    %p84 = scmp.eq.s32.totalorder %s16, 0
    %p85 = por %p83, %p84
    %s87 = sadd.s32 %s86, 1
    %p90 = scmp.eq.s32.totalorder %s10, 1
    %p91 = scmp.ne.s32.totalorder %s86, %s88
    %p92 = scmp.eq.s32.totalorder %s10, 0
    %p93 = por %p91, %p92
    %p94 = scmp.ne.s32.totalorder %s86, %s88
    %p95 = scmp.eq.s32.totalorder %s15, 1
    %p96 = por %p94, %p95
    %p97 = scmp.ne.s32.totalorder %s88, %s89
    %p98 = scmp.eq.s32.totalorder %s15, 0
    %p99 = por %p97, %p98
    %p100 = scmp.ne.s32.totalorder %s88, %s89
    %p101 = scmp.eq.s32.totalorder %s16, 1
    %p102 = por %p100, %p101
    %p104 = scmp.ne.s32.totalorder %s89, %s103
    %p105 = scmp.eq.s32.totalorder %s16, 0
    %p106 = por %p104, %p105
    %s107 = ssub.s32 %s10, %s17
    %p108 = scmp.eq.s32.totalorder %s107, 0
    %s110 = sadd.s32 %s109, 1
    %s111 = scalar_select %p108, %s109, %s110
    %p114 = pneg %p108
    %p115 = scmp.eq.s32.totalorder %s10, 1
    %p116 = por %p114, %p115
    %p117 = scmp.ne.s32.totalorder %s109, %s112
    %p118 = scmp.eq.s32.totalorder %s10, 0
    %p119 = por %p117, %p118
    %p120 = scmp.ne.s32.totalorder %s109, %s112
    %p121 = scmp.eq.s32.totalorder %s15, 1
    %p122 = por %p120, %p121
    %p123 = scmp.ne.s32.totalorder %s112, %s113
    %p124 = scmp.eq.s32.totalorder %s15, 0
    %p125 = por %p123, %p124
    %p126 = scmp.ne.s32.totalorder %s112, %s113
    %p127 = scmp.eq.s32.totalorder %s16, 1
    %p128 = por %p126, %p127
    %p130 = scmp.ne.s32.totalorder %s113, %s129
    %p131 = scmp.eq.s32.totalorder %s16, 0
    %p132 = por %p130, %p131
    %p133 = scmp.le.s32.totalorder 1, %s10
    %p134 = scmp.lt.s32.totalorder %s10, 3
    %p135 = pnand %p133, %p134
    %p136 = pneg %p135
    // Predicated region
    $region9: #{tpu_custom_call.1} parent=5 // pred_check
      _
    $region10: #{tpu_custom_call.1} parent=5 // pred_check_branch
      %138 = sbr.rel (%p135) target = $region12
    $region11: #{tpu_custom_call.1} parent=5 // pred_region
      %s139 = ssub.s32 %s10, 1
      // Predicated region
      $region13: #{tpu_custom_call.1} parent=11 // pred_check
        %p140 = pneg %p57
      $region14: #{tpu_custom_call.1} parent=11 // pred_check_branch
        %142 = sbr.rel (%p140) target = $region16
      $region15: #{tpu_custom_call.1} parent=11 // pred_region
        _
      $region16: #{tpu_custom_call.1} parent=11 // pred_fallthru
        _
      // Predicated region
      $region17: #{tpu_custom_call.1} parent=11 // pred_check
        %p143 = pneg %p78
      $region18: #{tpu_custom_call.1} parent=11 // pred_check_branch
        %145 = sbr.rel (%p143) target = $region20
      $region19: #{tpu_custom_call.1} parent=11 // pred_region
        _
      $region20: #{tpu_custom_call.1} parent=11 // pred_fallthru
        _
      // Predicated region
      $region21: #{tpu_custom_call.1} parent=11 // pred_check
        %p146 = pneg %p99
      $region22: #{tpu_custom_call.1} parent=11 // pred_check_branch
        %148 = sbr.rel (%p146) target = $region24
      $region23: #{tpu_custom_call.1} parent=11 // pred_region
        _
      $region24: #{tpu_custom_call.1} parent=11 // pred_fallthru
        _
    $region12: #{tpu_custom_call.1} parent=5 // pred_fallthru
      _
    %p149 = scmp.lt.s32.totalorder %s10, 2
    // Predicated region
    $region25: #{tpu_custom_call.1} parent=5 // pred_check
      %p150 = pneg %p149
    $region26: #{tpu_custom_call.1} parent=5 // pred_check_branch
      %152 = sbr.rel (%p150) target = $region28
    $region27: #{tpu_custom_call.1} parent=5 // pred_region
      // Predicated region
      $region29: #{tpu_custom_call.1} parent=27 // pred_check
        %p153 = pneg %p30
      $region30: #{tpu_custom_call.1} parent=27 // pred_check_branch
        %155 = sbr.rel (%p153) target = $region32
      $region31: #{tpu_custom_call.1} parent=27 // pred_region
        %s156 = smul.u32 4, %s10
        %p157 = scmp.lt.s32.totalorder %s156, 7
        %s158 = scalar_select %p157, %s156, 7
        %s159 = smul.addr %s158, 8
        %s160 = scalar_lea.vmem %s0, %s159
        %s161 = smul.u32 4, %s10
      $region32: #{tpu_custom_call.1} parent=27 // pred_fallthru
        _
    $region28: #{tpu_custom_call.1} parent=5 // pred_fallthru
      _
    %p162 = scmp.le.s32.totalorder 1, %s10
    %p163 = scmp.lt.s32.totalorder %s10, 3
    %p164 = pnand %p162, %p163
    %p165 = pneg %p164
    // Predicated region
    $region33: #{tpu_custom_call.1} parent=5 // pred_check
      _
    $region34: #{tpu_custom_call.1} parent=5 // pred_check_branch
      %167 = sbr.rel (%p164) target = $region36
    $region35: #{tpu_custom_call.1} parent=5 // pred_region
      %s168 = ssub.s32 %s10, 1
      %s169 = smul.u32 4, %s15
      %p170 = scmp.lt.s32.totalorder %s169, 7
      %s171 = scalar_select %p170, %s169, 7
      %s172 = smul.addr %s171, 8
      %s173 = scalar_lea.vmem %s0, %s172
      %p174 = pneg %p36
      %p175 = pneg %p33
      %p176 = pneg %p57
      %p177 = pneg %p54
      %p178 = pneg %p78
      %p179 = pneg %p75
      %p180 = pneg %p99
      %p181 = pneg %p96
      %p182 = pneg %p125
      %p183 = pneg %p122
      %s184 = smul.u32 4, %s15
      %p185 = scmp.lt.s32.totalorder %s184, 7
      %s186 = scalar_select %p185, %s184, 7
      %s187 = smul.addr %s186, 8
      %s188 = scalar_lea.vmem %s4, %s187
      %s189 = smul.u32 4, %s15
      %p190 = scmp.lt.s32.totalorder %s189, 7
      %s191 = scalar_select %p190, %s189, 7
      %s192 = smul.addr %s191, 8
      %s193 = scalar_lea.vmem %s0, %s192
      %s194 = smul.u32 4, %s15
      %s195 = smul.u32 4, %s15
      %p196 = scmp.lt.s32.totalorder %s195, 7
      %s197 = scalar_select %p196, %s195, 7
      %s198 = smul.addr %s197, 8
      %s199 = scalar_lea.vmem %s4, %s198
      %s200 = smul.u32 4, %s15
      %v202 = vld [vmem:[%s193] sm:$0xff]
      %v203 = vld [vmem:[%s193 + $0x8] sm:$0xff]
      %v204 = vld [vmem:[%s193 + $0x10] sm:$0xff]
      %v205 = vld [vmem:[%s193 + $0x18] sm:$0xff]
      %v206 = vld [vmem:[%s1] sm:$0x1]
      %208 = vset.pattern.permute.xlu0 0
      %209 = vperm.xlu0 %208, %v202
      %v210 = vpop.permute.xlu0 %209
      %213 = vset.pattern.permute.xlu0 0
      %214 = vperm.xlu0 %213, %v203
      %v215 = vpop.permute.xlu0 %214
      %218 = vset.pattern.permute.xlu0 0
      %219 = vperm.xlu0 %218, %v204
      %v220 = vpop.permute.xlu0 %219
      %223 = vset.pattern.permute.xlu0 0
      %224 = vperm.xlu0 %223, %v205
      %v225 = vpop.permute.xlu0 %224
      %v227 = vlaneseq
      %v228 = vshrl.u32 %v227, 7
      %v229 = vsub.s32 0, %v228
      %v230 = vrot.slane %v206, %v229
      %v231 = vmul.f32 %v210, %v230
      %v232 = vmul.f32 %v215, %v230
      %v233 = vmul.f32 %v220, %v230
      %v234 = vmul.f32 %v225, %v230
      %v235 = vld [vmem:[%s1 + $0x1] sm:$0x1]
      %236 = vset.pattern.permute.xlu0 1
      %237 = vperm.xlu0 %236, %v202
      %v238 = vpop.permute.xlu0 %237
      %240 = vset.pattern.permute.xlu0 1
      %241 = vperm.xlu0 %240, %v203
      %v242 = vpop.permute.xlu0 %241
      %244 = vset.pattern.permute.xlu0 1
      %245 = vperm.xlu0 %244, %v204
      %v246 = vpop.permute.xlu0 %245
      %248 = vset.pattern.permute.xlu0 1
      %249 = vperm.xlu0 %248, %v205
      %v250 = vpop.permute.xlu0 %249
      %v252 = vlaneseq
      %v253 = vshrl.u32 %v252, 7
      %v254 = vsub.s32 0, %v253
      %v255 = vrot.slane %v235, %v254
      %v256 = vmul.f32 %v238, %v255
      %v257 = vmul.f32 %v242, %v255
      %v258 = vmul.f32 %v246, %v255
      %v259 = vmul.f32 %v250, %v255
      %v260 = vadd.f32 %v231, %v256
      %v261 = vadd.f32 %v232, %v257
      %v262 = vadd.f32 %v233, %v258
      %v263 = vadd.f32 %v234, %v259
      %v264 = vld [vmem:[%s1 + $0x2] sm:$0x1]
      %v265 = vlaneseq
      %v266 = vshrl.u32 %v265, 7
      %v267 = vsub.s32 0, %v266
      %v268 = vrot.slane %v264, %v267
      %v269 = vadd.f32 %v260, %v268
      %v270 = vadd.f32 %v261, %v268
      %v271 = vadd.f32 %v262, %v268
      %v272 = vadd.f32 %v263, %v268
      %v273 = vmax.f32 %v269, 0.0
      %v274 = vmax.f32 %v270, 0.0
      %v275 = vmax.f32 %v271, 0.0
      %v276 = vmax.f32 %v272, 0.0
      %v277 = vpack.c.bf16 %v274, %v273
      %v278 = vpack.c.bf16 %v276, %v275
      %v279 = vld [vmem:[%s2] sm:$0xf]
      %v280 = vld [vmem:[%s2 + $0x4] sm:$0xf]
      %v281 = vld [vmem:[%s2 + $0x8] sm:$0xf]
      %v282 = vld [vmem:[%s2 + $0xc] sm:$0xf]
      %v283 = vld [vmem:[%s2 + $0x10] sm:$0xf]
      %v284 = vld [vmem:[%s2 + $0x14] sm:$0xf]
      %v285 = vld [vmem:[%s2 + $0x18] sm:$0xf]
      %v286 = vld [vmem:[%s2 + $0x1c] sm:$0xf]
      %v287 = vld [vmem:[%s1 + $0x3] sm:$0x1]
      %v288 = vlaneseq
      %v289 = vshrl.u32 %v288, 7
      %v290 = vsub.s32 0, %v289
      %v291 = vrot.slane %v287, %v290
      %v300 = vunpack.c.l.b16 %v279
      %v301 = vunpack.c.l.b16 %v280
      %v302 = vunpack.c.l.b16 %v281
      %v303 = vunpack.c.l.b16 %v282
      %v304 = vunpack.c.l.b16 %v283
      %v305 = vunpack.c.l.b16 %v284
      %v306 = vunpack.c.l.b16 %v285
      %v307 = vunpack.c.l.b16 %v286
      %v308 = vpack.c.b16 %v301, %v300
      %v309 = vpack.c.b16 %v303, %v302
      %v310 = vpack.c.b16 %v305, %v304
      %v311 = vpack.c.b16 %v307, %v306
      %vm316 = vcmask 523264
      %v318 = vsel %vm316, %v277, 0
      %v321 = vsel %vm316, %v278, 0
      %323 = vmatprep.subr.bf16.mxu0 0
      %324 = vmatpush1.bf16.msra.mxu0 0
      %325 = vmatprep.subr.bf16.mxu0 0
      %326 = vmatpush1.bf16.msra.mxu0 0
      %327 = vmatprep.subr.bf16.mxu0 0
      %328 = vmatpush1.bf16.msra.mxu0 0
      %329 = vmatprep.subr.bf16.mxu0 0
      %330 = vmatpush1.bf16.msra.mxu0 0
      %331 = vmatprep.subr.bf16.mxu0 0
      %332 = vmatpush1.bf16.msra.mxu0 %v311
      %333 = vmatprep.subr.bf16.mxu0 0
      %334 = vmatpush1.bf16.msra.mxu0 %v310
      %335 = vmatprep.subr.bf16.mxu0 0
      %336 = vmatpush1.bf16.msra.mxu0 %v309
      %337 = vmatprep.subr.bf16.mxu0 0
      %338 = vmatpush1.bf16.msra.mxu0 %v308
      %339 = vmatprep.subr.bf16.mxu0 0
      %340 = vmatpush2.bf16.msra.mxu0 0
      %341 = vmatprep.subr.bf16.mxu0 0
      %342 = vmatpush2.bf16.msra.mxu0 0
      %343 = vmatprep.subr.bf16.mxu0 0
      %344 = vmatpush2.bf16.msra.mxu0 0
      %345 = vmatprep.subr.bf16.mxu0 0
      %346 = vmatpush2.bf16.msra.mxu0 0
      %347 = vmatprep.subr.bf16.mxu0 0
      %348 = vmatpush2.bf16.msra.mxu0 0
      %349 = vmatprep.subr.bf16.mxu0 0
      %350 = vmatpush2.bf16.msra.mxu0 0
      %351 = vmatprep.subr.bf16.mxu0 0
      %352 = vmatpush2.bf16.msra.mxu0 0
      %353 = vmatprep.subr.bf16.mxu0 0
      %354 = vmatpush2.bf16.msra.mxu0 0
      %355 = vmatprep.mubr.bf16.mxu0 0
      %356 = vmatmul.mubr.bf16.gmra.mxu0 %v318
      %v357 = vpop.f32.mrf.mxu0
      %v358 = vadd.f32 %v291, %v357
      %v359 = vpop.f32.mrf.mxu0
      %v360 = vpop.f32.mrf.mxu0
      %v361 = vadd.f32 %v291, %v360
      %v362 = vpop.f32.mrf.mxu0
      %363 = vmatprep.mubr.bf16.mxu0 0
      %364 = vmatmul.mubr.bf16.gmra.mxu0 %v321
      %v365 = vpop.f32.mrf.mxu0
      %v366 = vadd.f32 %v291, %v365
      %v367 = vpop.f32.mrf.mxu0
      %v368 = vpop.f32.mrf.mxu0
      %v369 = vadd.f32 %v291, %v368
      %v370 = vpop.f32.mrf.mxu0
      %371 = vdwg.mxu0
      %v372 = vmax.f32 %v358, 0.0
      %v373 = vmax.f32 %v361, 0.0
      %v374 = vmax.f32 %v366, 0.0
      %v375 = vmax.f32 %v369, 0.0
      %v376 = vpack.c.bf16 %v373, %v372
      %v377 = vpack.c.bf16 %v375, %v374
      %v378 = vld [vmem:[%s3] sm:$0xf]
      %v379 = vld [vmem:[%s3 + $0x4] sm:$0xf]
      %v380 = vld [vmem:[%s3 + $0x8] sm:$0xf]
      %v381 = vld [vmem:[%s3 + $0xc] sm:$0xf]
      %v382 = vld [vmem:[%s3 + $0x10] sm:$0xf]
      %v383 = vld [vmem:[%s3 + $0x14] sm:$0xf]
      %v384 = vld [vmem:[%s3 + $0x18] sm:$0xf]
      %v385 = vld [vmem:[%s3 + $0x1c] sm:$0xf]
      %v386 = vld [vmem:[%s1 + $0x4] sm:$0x1]
      %v387 = vlaneseq
      %v388 = vshrl.u32 %v387, 7
      %v389 = vsub.s32 0, %v388
      %v390 = vrot.slane %v386, %v389
      %v399 = vunpack.c.l.b16 %v378
      %v400 = vunpack.c.l.b16 %v379
      %v401 = vunpack.c.l.b16 %v380
      %v402 = vunpack.c.l.b16 %v381
      %v403 = vunpack.c.l.b16 %v382
      %v404 = vunpack.c.l.b16 %v383
      %v405 = vunpack.c.l.b16 %v384
      %v406 = vunpack.c.l.b16 %v385
      %v407 = vpack.c.b16 %v400, %v399
      %v408 = vpack.c.b16 %v402, %v401
      %v409 = vpack.c.b16 %v404, %v403
      %v410 = vpack.c.b16 %v406, %v405
      %v416 = vsel %vm316, %v376, 0
      %v419 = vsel %vm316, %v377, 0
      %421 = vmatprep.subr.bf16.mxu0 0
      %422 = vmatpush1.bf16.msra.mxu0 0
      %423 = vmatprep.subr.bf16.mxu0 0
      %424 = vmatpush1.bf16.msra.mxu0 0
      %425 = vmatprep.subr.bf16.mxu0 0
      %426 = vmatpush1.bf16.msra.mxu0 0
      %427 = vmatprep.subr.bf16.mxu0 0
      %428 = vmatpush1.bf16.msra.mxu0 0
      %429 = vmatprep.subr.bf16.mxu0 0
      %430 = vmatpush1.bf16.msra.mxu0 %v410
      %431 = vmatprep.subr.bf16.mxu0 0
      %432 = vmatpush1.bf16.msra.mxu0 %v409
      %433 = vmatprep.subr.bf16.mxu0 0
      %434 = vmatpush1.bf16.msra.mxu0 %v408
      %435 = vmatprep.subr.bf16.mxu0 0
      %436 = vmatpush1.bf16.msra.mxu0 %v407
      %437 = vmatprep.subr.bf16.mxu0 0
      %438 = vmatpush2.bf16.msra.mxu0 0
      %439 = vmatprep.subr.bf16.mxu0 0
      %440 = vmatpush2.bf16.msra.mxu0 0
      %441 = vmatprep.subr.bf16.mxu0 0
      %442 = vmatpush2.bf16.msra.mxu0 0
      %443 = vmatprep.subr.bf16.mxu0 0
      %444 = vmatpush2.bf16.msra.mxu0 0
      %445 = vmatprep.subr.bf16.mxu0 0
      %446 = vmatpush2.bf16.msra.mxu0 0
      %447 = vmatprep.subr.bf16.mxu0 0
      %448 = vmatpush2.bf16.msra.mxu0 0
      %449 = vmatprep.subr.bf16.mxu0 0
      %450 = vmatpush2.bf16.msra.mxu0 0
      %451 = vmatprep.subr.bf16.mxu0 0
      %452 = vmatpush2.bf16.msra.mxu0 0
      %453 = vmatprep.mubr.bf16.mxu0 0
      %454 = vmatmul.mubr.bf16.gmra.mxu0 %v416
      %v455 = vpop.f32.mrf.mxu0
      %v456 = vadd.f32 %v390, %v455
      %v457 = vpop.f32.mrf.mxu0
      %v458 = vpop.f32.mrf.mxu0
      %v459 = vadd.f32 %v390, %v458
      %v460 = vpop.f32.mrf.mxu0
      %461 = vmatprep.mubr.bf16.mxu0 0
      %462 = vmatmul.mubr.bf16.gmra.mxu0 %v419
      %v463 = vpop.f32.mrf.mxu0
      %v464 = vadd.f32 %v390, %v463
      %v465 = vpop.f32.mrf.mxu0
      %v466 = vpop.f32.mrf.mxu0
      %v467 = vadd.f32 %v390, %v466
      %v468 = vpop.f32.mrf.mxu0
      %469 = vdwg.mxu0
      %vm470 = vcmask 31744
      %471 = vst.msk [vmem:[%s199] sm:$0xff] %vm470, %v456
      %472 = vst.msk [vmem:[%s199 + $0x8] sm:$0xff] %vm470, %v459
      %473 = vst.msk [vmem:[%s199 + $0x10] sm:$0xff] %vm470, %v464
      %474 = vst.msk [vmem:[%s199 + $0x18] sm:$0xff] %vm470, %v467
      %s475 = smul.u32 4, %s15
      %p476 = scmp.lt.s32.totalorder %s475, 7
      %s477 = scalar_select %p476, %s475, 7
      %s478 = smul.addr %s477, 8
      %s479 = scalar_lea.vmem %s4, %s478
      // Predicated region
      $region37: #{tpu_custom_call.1} parent=35 // pred_check
        %p480 = pneg %p122
      $region38: #{tpu_custom_call.1} parent=35 // pred_check_branch
        %482 = sbr.rel (%p480) target = $region40
      $region39: #{tpu_custom_call.1} parent=35 // pred_region
        %s483 = smul.u32 4, %s15
      $region40: #{tpu_custom_call.1} parent=35 // pred_fallthru
        _
    $region36: #{tpu_custom_call.1} parent=5 // pred_fallthru
      _
    %p484 = scmp.le.s32.totalorder 2, %s10
    // Predicated region
    $region41: #{tpu_custom_call.1} parent=5 // pred_check
      %p485 = pneg %p484
    $region42: #{tpu_custom_call.1} parent=5 // pred_check_branch
      %487 = sbr.rel (%p485) target = $region44
    $region43: #{tpu_custom_call.1} parent=5 // pred_region
      %s488 = ssub.s32 %s10, 2
      // Predicated region
      $region45: #{tpu_custom_call.1} parent=43 // pred_check
        %p489 = pneg %p128
      $region46: #{tpu_custom_call.1} parent=43 // pred_check_branch
        %491 = sbr.rel (%p489) target = $region48
      $region47: #{tpu_custom_call.1} parent=43 // pred_region
        %s492 = smul.u32 4, %s16
        %p493 = scmp.lt.s32.totalorder %s492, 7
        %s494 = scalar_select %p493, %s492, 7
        %s495 = smul.addr %s494, 8
        %s496 = scalar_lea.vmem %s4, %s495
      $region48: #{tpu_custom_call.1} parent=43 // pred_fallthru
        _
    $region44: #{tpu_custom_call.1} parent=5 // pred_fallthru
      _
  $region6: #{tpu_custom_call.1} parent=0 // loop_footer
    %s14 = sadd.s32 1, %s10
  $region7: #{tpu_custom_call.1} parent=0 // loop_footer_branch
    %9 = sbr.rel target = $region3
  $region8: #{tpu_custom_call.1} parent=0 // loop_exit
    _

</llo_original>
